<compile_context>
chip_gen: v5e
topology: v5e:2x2
jax: 0.10.0
libtpu: 0.0.40
codegen_flags: <defaults>
</compile_context>

<pallas_src>
import jax
import jax.numpy as jnp
from jax.experimental import pallas as pl
from jax.experimental.pallas import tpu as pltpu

HIDDEN = 128
LANES = 128
# Large finite negative for padded arm columns: exp(-1e30 - m) underflows to 0,
# so the padded columns never perturb the softmax (do NOT use -inf here).
PAD_NEG = -1e30


def fcn_policy_kernel(x_ref, w1_ref, b1_ref, w2_ref, b2_ref, o_ref):
    # affine_1 : Linear(1, 128).  Contraction dim is 1, so skip the MXU and do
    # a VPU broadcast multiply:  (bt, 1) * (1, 128) + (1, 128) -> (bt, 128).
    h = jnp.maximum(x_ref[...] * w1_ref[...] + b1_ref[...], 0.0)

    # affine_2 : (bt, 128) @ (128, A_pad) + (1, A_pad) -> (bt, A_pad) on the MXU.
    scores = jnp.dot(h, w2_ref[...], preferred_element_type=jnp.float32)
    scores = scores + b2_ref[...]

    # softmax over the (padded) arm axis, numerically stabilized.
    # Padded columns hold ~-1e30, so exp() gives exactly 0 there and the
    # denominator equals the unpadded softmax denominator.
    m = jnp.max(scores, axis=-1, keepdims=True)
    e = jnp.exp(scores - m)
    denom = jnp.sum(e, axis=-1, keepdims=True)
    # approx reciprocal (EUP) + one Newton-Raphson step: inv <- inv*(2 - d*inv)
    inv = pl.reciprocal(denom, approx=True)
    inv = inv * (2.0 - denom * inv)
    o_ref[...] = (e * inv).astype(o_ref.dtype)


def fcn_policy_forward(x, w1, b1, w2, b2, *, batch_tile=1024):
    """x: (B, 1) float32; returns (B, num_arms) float32 softmax probabilities."""
    batch = x.shape[0]
    num_arms = w2.shape[1]

    # Lane-dense arm axis: pad to a multiple of 128 lanes.
    arms_pad = max(LANES, ((num_arms + LANES - 1) // LANES) * LANES)
    if arms_pad != num_arms:
        w2p = jnp.pad(w2, ((0, 0), (0, arms_pad - num_arms)))          # zeros
        b2p = jnp.pad(b2, ((0, 0), (0, arms_pad - num_arms)),
                      constant_values=PAD_NEG)                          # -1e30
    else:
        w2p, b2p = w2, b2

    # One big tile per grid step; single step when the whole batch fits.
    bt = min(batch_tile, batch)
    grid = (pl.cdiv(batch, bt),)
    # TODO(synk): for very large batches on v7x, pick bt so the grid has an
    # even number of steps (both TensorCores get equal tiles) and set
    # vmem_limit_bytes explicitly once bt is pushed past ~4K rows.

    cost = pl.CostEstimate(
        flops=2 * batch * (HIDDEN + HIDDEN * arms_pad),
        transcendentals=batch * arms_pad,
        bytes_accessed=4 * (batch * 1               # x
                            + HIDDEN + HIDDEN       # w1, b1
                            + HIDDEN * arms_pad     # w2 (padded)
                            + arms_pad              # b2 (padded)
                            + batch * arms_pad),    # out (padded)
    )

    out_pad = pl.pallas_call(
        fcn_policy_kernel,
        out_shape=jax.ShapeDtypeStruct((batch, arms_pad), jnp.float32),
        grid=grid,
        in_specs=[
            # x: tiled over batch.
            pl.BlockSpec((bt, 1), lambda i: (i, 0)),
            # weights / biases: constant index_map -> DMA'd once, VMEM-resident.
            pl.BlockSpec((1, HIDDEN), lambda i: (0, 0)),           # W1 (1, 128)
            pl.BlockSpec((1, HIDDEN), lambda i: (0, 0)),           # b1 (1, 128)
            pl.BlockSpec((HIDDEN, arms_pad), lambda i: (0, 0)),    # W2 (128, Ap)
            pl.BlockSpec((1, arms_pad), lambda i: (0, 0)),         # b2 (1, Ap)
        ],
        out_specs=pl.BlockSpec((bt, arms_pad), lambda i: (i, 0)),
        compiler_params=pltpu.CompilerParams(
            # Batch tiles are independent -> shard across v7x's 2 TensorCores
            # when the grid has >= 2 steps.
            dimension_semantics=("parallel",),
        ),
        cost_estimate=cost,
    )(x, w1, b1, w2p, b2p)

    # Drop the padded arm columns (they are exactly 0 anyway).
    return out_pad[:, :num_arms]


def init_params(key, num_arms):
    """Deterministic init mimicking torch.nn.Linear default (U(-1/sqrt(fan_in), +))."""
    k1, k2, k3, k4 = jax.random.split(key, 4)
    # affine_1: Linear(1, 128)  -> W1 stored as (in=1, out=128)
    bound1 = 1.0 / jnp.sqrt(1.0)
    w1 = jax.random.uniform(k1, (1, HIDDEN), jnp.float32, -bound1, bound1)
    b1 = jax.random.uniform(k2, (1, HIDDEN), jnp.float32, -bound1, bound1)
    # affine_2: Linear(128, num_arms) -> W2 stored as (in=128, out=num_arms)
    bound2 = 1.0 / jnp.sqrt(float(HIDDEN))
    w2 = jax.random.uniform(k3, (HIDDEN, num_arms), jnp.float32, -bound2, bound2)
    b2 = jax.random.uniform(k4, (1, num_arms), jnp.float32, -bound2, bound2)
    return w1, b1, w2, b2


if __name__ == "__main__":
    key = jax.random.PRNGKey(0)
    kx, kp = jax.random.split(key)

    batch = 256      # <= default batch_tile -> single grid step
    num_arms = 8

    x = jax.random.normal(kx, (batch, 1), dtype=jnp.float32)
    w1, b1, w2, b2 = init_params(kp, num_arms)

    out = fcn_policy_forward(x, w1, b1, w2, b2)
    out = jax.block_until_ready(out)

    # sanity: rows of a softmax sum to 1
    assert out.shape == (batch, num_arms)
    assert jnp.allclose(jnp.sum(out, axis=1), 1.0, atol=1e-5)

    # reference check in plain JAX
    h_ref = jnp.maximum(x @ w1 + b1, 0.0)
    s_ref = h_ref @ w2 + b2
    ref = jax.nn.softmax(s_ref, axis=1)
    assert jnp.allclose(out, ref, atol=1e-5)

    print("KERNEL_OK")
</pallas_src>

<mosaic_0001>
module attributes {stable_mosaic.version = 11 : i64} {
  func.func @fcn_policy_kernel(%arg0: i32, %arg1: memref<256x1xf32, #tpu.memory_space<vmem>>, %arg2: memref<1x128xf32, #tpu.memory_space<vmem>>, %arg3: memref<1x128xf32, #tpu.memory_space<vmem>>, %arg4: memref<128x128xf32, #tpu.memory_space<vmem>>, %arg5: memref<1x128xf32, #tpu.memory_space<vmem>>, %arg6: memref<256x128xf32, #tpu.memory_space<vmem>>) attributes {dimension_semantics = [#tpu.dimension_semantics<parallel>], iteration_bounds = array<i64: 1>, scalar_prefetch = 0 : i64, scratch_operands = 0 : i64, tpu.core_type = #tpu.core_type<tc>, window_params = [{transform_indices = @transform_0, window_bounds = array<i64: 256, 1>}, {pipeline_mode = #tpu.pipeline_mode<synchronous>, transform_indices = @transform_1, window_bounds = array<i64: 1, 128>}, {pipeline_mode = #tpu.pipeline_mode<synchronous>, transform_indices = @transform_2, window_bounds = array<i64: 1, 128>}, {pipeline_mode = #tpu.pipeline_mode<synchronous>, transform_indices = @transform_3, window_bounds = array<i64: 128, 128>}, {pipeline_mode = #tpu.pipeline_mode<synchronous>, transform_indices = @transform_4, window_bounds = array<i64: 1, 128>}, {transform_indices = @transform_5, window_bounds = array<i64: 256, 128>}]} {
    %c0 = arith.constant 0 : index
    %c0_0 = arith.constant 0 : index
    %0 = vector.load %arg1[%c0, %c0_0] : memref<256x1xf32, #tpu.memory_space<vmem>>, vector<256x1xf32>
    %c0_1 = arith.constant 0 : index
    %c0_2 = arith.constant 0 : index
    %1 = vector.load %arg2[%c0_1, %c0_2] : memref<1x128xf32, #tpu.memory_space<vmem>>, vector<1x128xf32>
    %2 = vector.broadcast %0 : vector<256x1xf32> to vector<256x128xf32>
    %3 = vector.broadcast %1 : vector<1x128xf32> to vector<256x128xf32>
    %4 = arith.mulf %2, %3 : vector<256x128xf32>
    %c0_3 = arith.constant 0 : index
    %c0_4 = arith.constant 0 : index
    %5 = vector.load %arg3[%c0_3, %c0_4] : memref<1x128xf32, #tpu.memory_space<vmem>>, vector<1x128xf32>
    %6 = vector.broadcast %5 : vector<1x128xf32> to vector<256x128xf32>
    %7 = arith.addf %4, %6 : vector<256x128xf32>
    %cst = arith.constant 0.000000e+00 : f32
    %8 = vector.broadcast %cst : f32 to vector<256x128xf32>
    %9 = arith.maximumf %7, %8 : vector<256x128xf32>
    %c0_5 = arith.constant 0 : index
    %c0_6 = arith.constant 0 : index
    %10 = vector.load %arg4[%c0_5, %c0_6] : memref<128x128xf32, #tpu.memory_space<vmem>>, vector<128x128xf32>
    %cst_7 = arith.constant dense<0.000000e+00> : vector<256x128xf32>
    %11 = tpu.matmul %9, %10, %cst_7 {dimension_numbers = #tpu.dot_dimension_numbers<[1], [0], [0], [1], [0, 0, 1, 1], [], []>} : vector<256x128xf32>, vector<128x128xf32>, vector<256x128xf32> -> vector<256x128xf32>
    %c0_8 = arith.constant 0 : index
    %c0_9 = arith.constant 0 : index
    %12 = vector.load %arg5[%c0_8, %c0_9] : memref<1x128xf32, #tpu.memory_space<vmem>>, vector<1x128xf32>
    %13 = vector.broadcast %12 : vector<1x128xf32> to vector<256x128xf32>
    %14 = arith.addf %11, %13 : vector<256x128xf32>
    %cst_10 = arith.constant dense<0xFF800000> : vector<256xf32>
    %15 = vector.multi_reduction <maximumf>, %14, %cst_10 [1] : vector<256x128xf32> to vector<256xf32>
    %16 = vector.shape_cast %15 : vector<256xf32> to vector<256x1xf32>
    %17 = vector.broadcast %16 : vector<256x1xf32> to vector<256x128xf32>
    %18 = arith.subf %14, %17 : vector<256x128xf32>
    %19 = math.exp %18 : vector<256x128xf32>
    %cst_11 = arith.constant dense<0.000000e+00> : vector<256xf32>
    %20 = vector.multi_reduction <add>, %19, %cst_11 [1] : vector<256x128xf32> to vector<256xf32>
    %21 = vector.shape_cast %20 : vector<256xf32> to vector<256x1xf32>
    %22 = tpu.reciprocal %21 {approx = true} : vector<256x1xf32> -> vector<256x1xf32>
    %23 = arith.mulf %21, %22 : vector<256x1xf32>
    %cst_12 = arith.constant 2.000000e+00 : f32
    %24 = vector.broadcast %cst_12 : f32 to vector<256x1xf32>
    %25 = arith.subf %24, %23 : vector<256x1xf32>
    %26 = arith.mulf %22, %25 : vector<256x1xf32>
    %27 = vector.broadcast %26 : vector<256x1xf32> to vector<256x128xf32>
    %28 = arith.mulf %19, %27 : vector<256x128xf32>
    %c0_13 = arith.constant 0 : index
    %c0_14 = arith.constant 0 : index
    %29 = vector.load %arg6[%c0_13, %c0_14] : memref<256x128xf32, #tpu.memory_space<vmem>>, vector<256x128xf32>
    tpu.vector_store %arg6[%c0_13, %c0_14], %28 {strides = array<i32>} : memref<256x128xf32, #tpu.memory_space<vmem>>, vector<256x128xf32>,
    return
  }
  func.func @transform_0(%arg0: i32) -> (i32, i32) {
    %c0_i32 = arith.constant 0 : i32
    %c0_i32_0 = arith.constant 0 : i32
    return %arg0, %c0_i32 : i32, i32
  }
  func.func @transform_1(%arg0: i32) -> (i32, i32) {
    %c0_i32 = arith.constant 0 : i32
    %c0_i32_0 = arith.constant 0 : i32
    %c0_i32_1 = arith.constant 0 : i32
    return %c0_i32, %c0_i32_0 : i32, i32
  }
  func.func @transform_2(%arg0: i32) -> (i32, i32) {
    %c0_i32 = arith.constant 0 : i32
    %c0_i32_0 = arith.constant 0 : i32
    %c0_i32_1 = arith.constant 0 : i32
    return %c0_i32, %c0_i32_0 : i32, i32
  }
  func.func @transform_3(%arg0: i32) -> (i32, i32) {
    %c0_i32 = arith.constant 0 : i32
    %c0_i32_0 = arith.constant 0 : i32
    %c0_i32_1 = arith.constant 0 : i32
    return %c0_i32, %c0_i32_0 : i32, i32
  }
  func.func @transform_4(%arg0: i32) -> (i32, i32) {
    %c0_i32 = arith.constant 0 : i32
    %c0_i32_0 = arith.constant 0 : i32
    %c0_i32_1 = arith.constant 0 : i32
    return %c0_i32, %c0_i32_0 : i32, i32
  }
  func.func @transform_5(%arg0: i32) -> (i32, i32) {
    %c0_i32 = arith.constant 0 : i32
    %c0_i32_0 = arith.constant 0 : i32
    return %arg0, %c0_i32 : i32, i32
  }
}

</mosaic_0001>

<llo_original>
// kernel: tpu_custom_call.1
$region0: #{tpu_custom_call.1}
  #allocation0 [shape = 'u32[]', space=smem, size = 0x4, offset = 0x4, fixed_abs, tag = 'smem constant byte address 0x4 - core index']
  #allocation1 [shape = 'u32[72,128]{1,0:T(1,128)}', space=vmem, size = 0x9000, scoped, tag = 'internal scratch']
  %s0 = inlined_call_operand.vmem [shape: f32[256,1], index: 0, kind: input, shape index: {}]
  %s1 = inlined_call_operand.vmem [shape: f32[1,128], index: 1, kind: input, shape index: {}]
  %s2 = inlined_call_operand.vmem [shape: f32[1,128], index: 2, kind: input, shape index: {}]
  %s3 = inlined_call_operand.vmem [shape: f32[128,128], index: 3, kind: input, shape index: {}]
  %s4 = inlined_call_operand.vmem [shape: f32[1,128], index: 4, kind: input, shape index: {}]
  %s5 = inlined_call_operand.hbm [shape: f32[256,128], index: 5, kind: output, shape index: {}]
  %s6 = sld [smem:[#allocation0]]
  $region30: #{tpu_custom_call.1} parent=0
    _
  %s8 = ssub.s32 1, %s6
  %s9 = scalar_select 0, %s8, %s6
  $region1: #{tpu_custom_call.1} parent=0
    #allocation2 [shape = 'u8[131072]{0}', space=vmem, size = 0x20000, scoped, tag = 'output window, operand 0, single buffered']
    #allocation3 [shape = 's32[1]{0}', space=sflag, size = 0x4, scoped, tag = 'scoped memory for tpu_custom_call.1']
    %10 = vsyncpa [#allocation3], 0
    // Predicated region
    $region2: #{tpu_custom_call.1} parent=1 // pred_check
      _
    $region3: #{tpu_custom_call.1} parent=1 // pred_check_branch
      %12 = sbr.rel (0) target = $region5
    $region4: #{tpu_custom_call.1} parent=1 // pred_region
      _
    $region5: #{tpu_custom_call.1} parent=1 // pred_fallthru
      _
    // Predicated region
    $region6: #{tpu_custom_call.1} parent=1 // pred_check
      _
    $region7: #{tpu_custom_call.1} parent=1 // pred_check_branch
      %14 = sbr.rel (0) target = $region9
    $region8: #{tpu_custom_call.1} parent=1 // pred_region
      _
    $region9: #{tpu_custom_call.1} parent=1 // pred_fallthru
      _
    // Predicated region
    $region10: #{tpu_custom_call.1} parent=1 // pred_check
      _
    $region11: #{tpu_custom_call.1} parent=1 // pred_check_branch
      %16 = sbr.rel (0) target = $region13
    $region12: #{tpu_custom_call.1} parent=1 // pred_region
      _
    $region13: #{tpu_custom_call.1} parent=1 // pred_fallthru
      _
    // Predicated region
    $region14: #{tpu_custom_call.1} parent=1 // pred_check
      _
    $region15: #{tpu_custom_call.1} parent=1 // pred_check_branch
      %18 = sbr.rel (0) target = $region17
    $region16: #{tpu_custom_call.1} parent=1 // pred_region
      _
    $region17: #{tpu_custom_call.1} parent=1 // pred_fallthru
      _
    // Predicated region
    $region18: #{tpu_custom_call.1} parent=1 // pred_check
      _
    $region19: #{tpu_custom_call.1} parent=1 // pred_check_branch
      %20 = sbr.rel (0) target = $region21
    $region20: #{tpu_custom_call.1} parent=1 // pred_region
      _
    $region21: #{tpu_custom_call.1} parent=1 // pred_fallthru
      _
    %v21 = vld [vmem:[%s0] sm:$0xff]
    %v22 = vld [vmem:[%s0 + $0x8] sm:$0xff]
    %v23 = vld [vmem:[%s0 + $0x10] sm:$0xff]
    %v24 = vld [vmem:[%s0 + $0x18] sm:$0xff]
    %v25 = vld [vmem:[%s0 + $0x20] sm:$0xff]
    %v26 = vld [vmem:[%s0 + $0x28] sm:$0xff]
    %v27 = vld [vmem:[%s0 + $0x30] sm:$0xff]
    %v28 = vld [vmem:[%s0 + $0x38] sm:$0xff]
    %v29 = vld [vmem:[%s0 + $0x40] sm:$0xff]
    %v30 = vld [vmem:[%s0 + $0x48] sm:$0xff]
    %v31 = vld [vmem:[%s0 + $0x50] sm:$0xff]
    %v32 = vld [vmem:[%s0 + $0x58] sm:$0xff]
    %v33 = vld [vmem:[%s0 + $0x60] sm:$0xff]
    %v34 = vld [vmem:[%s0 + $0x68] sm:$0xff]
    %v35 = vld [vmem:[%s0 + $0x70] sm:$0xff]
    %v36 = vld [vmem:[%s0 + $0x78] sm:$0xff]
    %v37 = vld [vmem:[%s0 + $0x80] sm:$0xff]
    %v38 = vld [vmem:[%s0 + $0x88] sm:$0xff]
    %v39 = vld [vmem:[%s0 + $0x90] sm:$0xff]
    %v40 = vld [vmem:[%s0 + $0x98] sm:$0xff]
    %v41 = vld [vmem:[%s0 + $0xa0] sm:$0xff]
    %v42 = vld [vmem:[%s0 + $0xa8] sm:$0xff]
    %v43 = vld [vmem:[%s0 + $0xb0] sm:$0xff]
    %v44 = vld [vmem:[%s0 + $0xb8] sm:$0xff]
    %v45 = vld [vmem:[%s0 + $0xc0] sm:$0xff]
    %v46 = vld [vmem:[%s0 + $0xc8] sm:$0xff]
    %v47 = vld [vmem:[%s0 + $0xd0] sm:$0xff]
    %v48 = vld [vmem:[%s0 + $0xd8] sm:$0xff]
    %v49 = vld [vmem:[%s0 + $0xe0] sm:$0xff]
    %v50 = vld [vmem:[%s0 + $0xe8] sm:$0xff]
    %v51 = vld [vmem:[%s0 + $0xf0] sm:$0xff]
    %v52 = vld [vmem:[%s0 + $0xf8] sm:$0xff]
    %v53 = vld [vmem:[%s1] sm:$0x1]
    %55 = vset.pattern.permute.xlu0 0
    %56 = vperm.xlu0 %55, %v21
    %v57 = vpop.permute.xlu0 %56
    %60 = vset.pattern.permute.xlu0 0
    %61 = vperm.xlu0 %60, %v22
    %v62 = vpop.permute.xlu0 %61
    %65 = vset.pattern.permute.xlu0 0
    %66 = vperm.xlu0 %65, %v23
    %v67 = vpop.permute.xlu0 %66
    %70 = vset.pattern.permute.xlu0 0
    %71 = vperm.xlu0 %70, %v24
    %v72 = vpop.permute.xlu0 %71
    %75 = vset.pattern.permute.xlu0 0
    %76 = vperm.xlu0 %75, %v25
    %v77 = vpop.permute.xlu0 %76
    %80 = vset.pattern.permute.xlu0 0
    %81 = vperm.xlu0 %80, %v26
    %v82 = vpop.permute.xlu0 %81
    %85 = vset.pattern.permute.xlu0 0
    %86 = vperm.xlu0 %85, %v27
    %v87 = vpop.permute.xlu0 %86
    %90 = vset.pattern.permute.xlu0 0
    %91 = vperm.xlu0 %90, %v28
    %v92 = vpop.permute.xlu0 %91
    %95 = vset.pattern.permute.xlu0 0
    %96 = vperm.xlu0 %95, %v29
    %v97 = vpop.permute.xlu0 %96
    %100 = vset.pattern.permute.xlu0 0
    %101 = vperm.xlu0 %100, %v30
    %v102 = vpop.permute.xlu0 %101
    %105 = vset.pattern.permute.xlu0 0
    %106 = vperm.xlu0 %105, %v31
    %v107 = vpop.permute.xlu0 %106
    %110 = vset.pattern.permute.xlu0 0
    %111 = vperm.xlu0 %110, %v32
    %v112 = vpop.permute.xlu0 %111
    %115 = vset.pattern.permute.xlu0 0
    %116 = vperm.xlu0 %115, %v33
    %v117 = vpop.permute.xlu0 %116
    %120 = vset.pattern.permute.xlu0 0
    %121 = vperm.xlu0 %120, %v34
    %v122 = vpop.permute.xlu0 %121
    %125 = vset.pattern.permute.xlu0 0
    %126 = vperm.xlu0 %125, %v35
    %v127 = vpop.permute.xlu0 %126
    %130 = vset.pattern.permute.xlu0 0
    %131 = vperm.xlu0 %130, %v36
    %v132 = vpop.permute.xlu0 %131
    %135 = vset.pattern.permute.xlu0 0
    %136 = vperm.xlu0 %135, %v37
    %v137 = vpop.permute.xlu0 %136
    %140 = vset.pattern.permute.xlu0 0
    %141 = vperm.xlu0 %140, %v38
    %v142 = vpop.permute.xlu0 %141
    %145 = vset.pattern.permute.xlu0 0
    %146 = vperm.xlu0 %145, %v39
    %v147 = vpop.permute.xlu0 %146
    %150 = vset.pattern.permute.xlu0 0
    %151 = vperm.xlu0 %150, %v40
    %v152 = vpop.permute.xlu0 %151
    %155 = vset.pattern.permute.xlu0 0
    %156 = vperm.xlu0 %155, %v41
    %v157 = vpop.permute.xlu0 %156
    %160 = vset.pattern.permute.xlu0 0
    %161 = vperm.xlu0 %160, %v42
    %v162 = vpop.permute.xlu0 %161
    %165 = vset.pattern.permute.xlu0 0
    %166 = vperm.xlu0 %165, %v43
    %v167 = vpop.permute.xlu0 %166
    %170 = vset.pattern.permute.xlu0 0
    %171 = vperm.xlu0 %170, %v44
    %v172 = vpop.permute.xlu0 %171
    %175 = vset.pattern.permute.xlu0 0
    %176 = vperm.xlu0 %175, %v45
    %v177 = vpop.permute.xlu0 %176
    %180 = vset.pattern.permute.xlu0 0
    %181 = vperm.xlu0 %180, %v46
    %v182 = vpop.permute.xlu0 %181
    %185 = vset.pattern.permute.xlu0 0
    %186 = vperm.xlu0 %185, %v47
    %v187 = vpop.permute.xlu0 %186
    %190 = vset.pattern.permute.xlu0 0
    %191 = vperm.xlu0 %190, %v48
    %v192 = vpop.permute.xlu0 %191
    %195 = vset.pattern.permute.xlu0 0
    %196 = vperm.xlu0 %195, %v49
    %v197 = vpop.permute.xlu0 %196
    %200 = vset.pattern.permute.xlu0 0
    %201 = vperm.xlu0 %200, %v50
    %v202 = vpop.permute.xlu0 %201
    %205 = vset.pattern.permute.xlu0 0
    %206 = vperm.xlu0 %205, %v51
    %v207 = vpop.permute.xlu0 %206
    %210 = vset.pattern.permute.xlu0 0
    %211 = vperm.xlu0 %210, %v52
    %v212 = vpop.permute.xlu0 %211
    %v215 = vperm.slane %v53, 0
    %v217 = vmul.f32 %v57, %v215
    %v218 = vmul.f32 %v62, %v215
    %v219 = vmul.f32 %v67, %v215
    %v220 = vmul.f32 %v72, %v215
    %v221 = vmul.f32 %v77, %v215
    %v222 = vmul.f32 %v82, %v215
    %v223 = vmul.f32 %v87, %v215
    %v224 = vmul.f32 %v92, %v215
    %v225 = vmul.f32 %v97, %v215
    %v226 = vmul.f32 %v102, %v215
    %v227 = vmul.f32 %v107, %v215
    %v228 = vmul.f32 %v112, %v215
    %v229 = vmul.f32 %v117, %v215
    %v230 = vmul.f32 %v122, %v215
    %v231 = vmul.f32 %v127, %v215
    %v232 = vmul.f32 %v132, %v215
    %v233 = vmul.f32 %v137, %v215
    %v234 = vmul.f32 %v142, %v215
    %v235 = vmul.f32 %v147, %v215
    %v236 = vmul.f32 %v152, %v215
    %v237 = vmul.f32 %v157, %v215
    %v238 = vmul.f32 %v162, %v215
    %v239 = vmul.f32 %v167, %v215
    %v240 = vmul.f32 %v172, %v215
    %v241 = vmul.f32 %v177, %v215
    %v242 = vmul.f32 %v182, %v215
    %v243 = vmul.f32 %v187, %v215
    %v244 = vmul.f32 %v192, %v215
    %v245 = vmul.f32 %v197, %v215
    %v246 = vmul.f32 %v202, %v215
    %v247 = vmul.f32 %v207, %v215
    %v248 = vmul.f32 %v212, %v215
    %v249 = vld [vmem:[%s2] sm:$0x1]
    %v251 = vperm.slane %v249, 0
    %v253 = vadd.f32 %v217, %v251
    %v254 = vadd.f32 %v218, %v251
    %v255 = vadd.f32 %v219, %v251
    %v256 = vadd.f32 %v220, %v251
    %v257 = vadd.f32 %v221, %v251
    %v258 = vadd.f32 %v222, %v251
    %v259 = vadd.f32 %v223, %v251
    %v260 = vadd.f32 %v224, %v251
    %v261 = vadd.f32 %v225, %v251
    %v262 = vadd.f32 %v226, %v251
    %v263 = vadd.f32 %v227, %v251
    %v264 = vadd.f32 %v228, %v251
    %v265 = vadd.f32 %v229, %v251
    %v266 = vadd.f32 %v230, %v251
    %v267 = vadd.f32 %v231, %v251
    %v268 = vadd.f32 %v232, %v251
    %v269 = vadd.f32 %v233, %v251
    %v270 = vadd.f32 %v234, %v251
    %v271 = vadd.f32 %v235, %v251
    %v272 = vadd.f32 %v236, %v251
    %v273 = vadd.f32 %v237, %v251
    %v274 = vadd.f32 %v238, %v251
    %v275 = vadd.f32 %v239, %v251
    %v276 = vadd.f32 %v240, %v251
    %v277 = vadd.f32 %v241, %v251
    %v278 = vadd.f32 %v242, %v251
    %v279 = vadd.f32 %v243, %v251
    %v280 = vadd.f32 %v244, %v251
    %v281 = vadd.f32 %v245, %v251
    %v282 = vadd.f32 %v246, %v251
    %v283 = vadd.f32 %v247, %v251
    %v284 = vadd.f32 %v248, %v251
    %v285 = vmax.f32 %v253, 0.0
    %v286 = vmax.f32 %v254, 0.0
    %v287 = vmax.f32 %v255, 0.0
    %v288 = vmax.f32 %v256, 0.0
    %v289 = vmax.f32 %v257, 0.0
    %v290 = vmax.f32 %v258, 0.0
    %v291 = vmax.f32 %v259, 0.0
    %v292 = vmax.f32 %v260, 0.0
    %v293 = vmax.f32 %v261, 0.0
    %v294 = vmax.f32 %v262, 0.0
    %v295 = vmax.f32 %v263, 0.0
    %v296 = vmax.f32 %v264, 0.0
    %v297 = vmax.f32 %v265, 0.0
    %v298 = vmax.f32 %v266, 0.0
    %v299 = vmax.f32 %v267, 0.0
    %v300 = vmax.f32 %v268, 0.0
    %v301 = vmax.f32 %v269, 0.0
    %v302 = vmax.f32 %v270, 0.0
    %v303 = vmax.f32 %v271, 0.0
    %v304 = vmax.f32 %v272, 0.0
    %v305 = vmax.f32 %v273, 0.0
    %v306 = vmax.f32 %v274, 0.0
    %v307 = vmax.f32 %v275, 0.0
    %v308 = vmax.f32 %v276, 0.0
    %v309 = vmax.f32 %v277, 0.0
    %v310 = vmax.f32 %v278, 0.0
    %v311 = vmax.f32 %v279, 0.0
    %v312 = vmax.f32 %v280, 0.0
    %v313 = vmax.f32 %v281, 0.0
    %v314 = vmax.f32 %v282, 0.0
    %v315 = vmax.f32 %v283, 0.0
    %v316 = vmax.f32 %v284, 0.0
    %v317 = vld [vmem:[%s3] sm:$0xff]
    %v318 = vld [vmem:[%s3 + $0x8] sm:$0xff]
    %v319 = vld [vmem:[%s3 + $0x10] sm:$0xff]
    %v320 = vld [vmem:[%s3 + $0x18] sm:$0xff]
    %v321 = vld [vmem:[%s3 + $0x20] sm:$0xff]
    %v322 = vld [vmem:[%s3 + $0x28] sm:$0xff]
    %v323 = vld [vmem:[%s3 + $0x30] sm:$0xff]
    %v324 = vld [vmem:[%s3 + $0x38] sm:$0xff]
    %v325 = vld [vmem:[%s3 + $0x40] sm:$0xff]
    %v326 = vld [vmem:[%s3 + $0x48] sm:$0xff]
    %v327 = vld [vmem:[%s3 + $0x50] sm:$0xff]
    %v328 = vld [vmem:[%s3 + $0x58] sm:$0xff]
    %v329 = vld [vmem:[%s3 + $0x60] sm:$0xff]
    %v330 = vld [vmem:[%s3 + $0x68] sm:$0xff]
    %v331 = vld [vmem:[%s3 + $0x70] sm:$0xff]
    %v332 = vld [vmem:[%s3 + $0x78] sm:$0xff]
    %v333 = vld [vmem:[%s4] sm:$0x1]
    %v335 = vperm.slane %v333, 0
    %337 = vmatpush.msra.mxu0 %v332
    %338 = vmatpush.msra.mxu0 %v331
    %339 = vmatpush.msra.mxu0 %v330
    %340 = vmatpush.msra.mxu0 %v329
    %341 = vmatpush.msra.mxu0 %v328
    %342 = vmatpush.msra.mxu0 %v327
    %343 = vmatpush.msra.mxu0 %v326
    %344 = vmatpush.msra.mxu0 %v325
    %345 = vmatpush.msra.mxu0 %v324
    %346 = vmatpush.msra.mxu0 %v323
    %347 = vmatpush.msra.mxu0 %v322
    %348 = vmatpush.msra.mxu0 %v321
    %349 = vmatpush.msra.mxu0 %v320
    %350 = vmatpush.msra.mxu0 %v319
    %351 = vmatpush.msra.mxu0 %v318
    %352 = vmatpush.msra.mxu0 %v317
    %353 = vmatmul.f32.gmra.mxu0 %v285
    %v354 = vpop.f32.mrf.mxu0
    %v355 = vadd.f32 %v335, %v354
    %356 = vmatmul.f32.gmra.mxu0 %v286
    %v357 = vpop.f32.mrf.mxu0
    %v358 = vadd.f32 %v335, %v357
    %359 = vmatmul.f32.gmra.mxu0 %v287
    %v360 = vpop.f32.mrf.mxu0
    %v361 = vadd.f32 %v335, %v360
    %362 = vmatmul.f32.gmra.mxu0 %v288
    %v363 = vpop.f32.mrf.mxu0
    %v364 = vadd.f32 %v335, %v363
    %365 = vmatmul.f32.gmra.mxu0 %v289
    %v366 = vpop.f32.mrf.mxu0
    %v367 = vadd.f32 %v335, %v366
    %368 = vmatmul.f32.gmra.mxu0 %v290
    %v369 = vpop.f32.mrf.mxu0
    %v370 = vadd.f32 %v335, %v369
    %371 = vmatmul.f32.gmra.mxu0 %v291
    %v372 = vpop.f32.mrf.mxu0
    %v373 = vadd.f32 %v335, %v372
    %374 = vmatmul.f32.gmra.mxu0 %v292
    %v375 = vpop.f32.mrf.mxu0
    %v376 = vadd.f32 %v335, %v375
    %377 = vmatmul.f32.gmra.mxu0 %v293
    %v378 = vpop.f32.mrf.mxu0
    %v379 = vadd.f32 %v335, %v378
    %380 = vmatmul.f32.gmra.mxu0 %v294
    %v381 = vpop.f32.mrf.mxu0
    %v382 = vadd.f32 %v335, %v381
    %383 = vmatmul.f32.gmra.mxu0 %v295
    %v384 = vpop.f32.mrf.mxu0
    %v385 = vadd.f32 %v335, %v384
    %386 = vmatmul.f32.gmra.mxu0 %v296
    %v387 = vpop.f32.mrf.mxu0
    %v388 = vadd.f32 %v335, %v387
    %389 = vmatmul.f32.gmra.mxu0 %v297
    %v390 = vpop.f32.mrf.mxu0
    %v391 = vadd.f32 %v335, %v390
    %392 = vmatmul.f32.gmra.mxu0 %v298
    %v393 = vpop.f32.mrf.mxu0
    %v394 = vadd.f32 %v335, %v393
    %395 = vmatmul.f32.gmra.mxu0 %v299
    %v396 = vpop.f32.mrf.mxu0
    %v397 = vadd.f32 %v335, %v396
    %398 = vmatmul.f32.gmra.mxu0 %v300
    %v399 = vpop.f32.mrf.mxu0
    %v400 = vadd.f32 %v335, %v399
    %401 = vmatmul.f32.gmra.mxu0 %v301
    %v402 = vpop.f32.mrf.mxu0
    %v403 = vadd.f32 %v335, %v402
    %404 = vmatmul.f32.gmra.mxu0 %v302
    %v405 = vpop.f32.mrf.mxu0
    %v406 = vadd.f32 %v335, %v405
    %407 = vmatmul.f32.gmra.mxu0 %v303
    %v408 = vpop.f32.mrf.mxu0
    %v409 = vadd.f32 %v335, %v408
    %410 = vmatmul.f32.gmra.mxu0 %v304
    %v411 = vpop.f32.mrf.mxu0
    %v412 = vadd.f32 %v335, %v411
    %413 = vmatmul.f32.gmra.mxu0 %v305
    %v414 = vpop.f32.mrf.mxu0
    %v415 = vadd.f32 %v335, %v414
    %416 = vmatmul.f32.gmra.mxu0 %v306
    %v417 = vpop.f32.mrf.mxu0
    %v418 = vadd.f32 %v335, %v417
    %419 = vmatmul.f32.gmra.mxu0 %v307
    %v420 = vpop.f32.mrf.mxu0
    %v421 = vadd.f32 %v335, %v420
    %422 = vmatmul.f32.gmra.mxu0 %v308
    %v423 = vpop.f32.mrf.mxu0
    %v424 = vadd.f32 %v335, %v423
    %425 = vmatmul.f32.gmra.mxu0 %v309
    %v426 = vpop.f32.mrf.mxu0
    %v427 = vadd.f32 %v335, %v426
    %428 = vmatmul.f32.gmra.mxu0 %v310
    %v429 = vpop.f32.mrf.mxu0
    %v430 = vadd.f32 %v335, %v429
    %431 = vmatmul.f32.gmra.mxu0 %v311
    %v432 = vpop.f32.mrf.mxu0
    %v433 = vadd.f32 %v335, %v432
    %434 = vmatmul.f32.gmra.mxu0 %v312
    %v435 = vpop.f32.mrf.mxu0
    %v436 = vadd.f32 %v335, %v435
    %437 = vmatmul.f32.gmra.mxu0 %v313
    %v438 = vpop.f32.mrf.mxu0
    %v439 = vadd.f32 %v335, %v438
    %440 = vmatmul.f32.gmra.mxu0 %v314
    %v441 = vpop.f32.mrf.mxu0
    %v442 = vadd.f32 %v335, %v441
    %443 = vmatmul.f32.gmra.mxu0 %v315
    %v444 = vpop.f32.mrf.mxu0
    %v445 = vadd.f32 %v335, %v444
    %446 = vmatmul.f32.gmra.mxu0 %v316
    %v447 = vpop.f32.mrf.mxu0
    %v448 = vadd.f32 %v335, %v447
    %449 = vdwg.mxu0
    %450 = vmax.xlane.f32.xlu0 %v355
    %v451 = vpop.xlane.xlu0 %450
    %452 = vmax.xlane.f32.xlu0 %v358
    %v453 = vpop.xlane.xlu0 %452
    %454 = vmax.xlane.f32.xlu0 %v361
    %v455 = vpop.xlane.xlu0 %454
    %456 = vmax.xlane.f32.xlu0 %v364
    %v457 = vpop.xlane.xlu0 %456
    %458 = vmax.xlane.f32.xlu0 %v367
    %v459 = vpop.xlane.xlu0 %458
    %460 = vmax.xlane.f32.xlu0 %v370
    %v461 = vpop.xlane.xlu0 %460
    %462 = vmax.xlane.f32.xlu0 %v373
    %v463 = vpop.xlane.xlu0 %462
    %464 = vmax.xlane.f32.xlu0 %v376
    %v465 = vpop.xlane.xlu0 %464
    %466 = vmax.xlane.f32.xlu0 %v379
    %v467 = vpop.xlane.xlu0 %466
    %468 = vmax.xlane.f32.xlu0 %v382
    %v469 = vpop.xlane.xlu0 %468
    %470 = vmax.xlane.f32.xlu0 %v385
    %v471 = vpop.xlane.xlu0 %470
    %472 = vmax.xlane.f32.xlu0 %v388
    %v473 = vpop.xlane.xlu0 %472
    %474 = vmax.xlane.f32.xlu0 %v391
    %v475 = vpop.xlane.xlu0 %474
    %476 = vmax.xlane.f32.xlu0 %v394
    %v477 = vpop.xlane.xlu0 %476
    %478 = vmax.xlane.f32.xlu0 %v397
    %v479 = vpop.xlane.xlu0 %478
    %480 = vmax.xlane.f32.xlu0 %v400
    %v481 = vpop.xlane.xlu0 %480
    %482 = vmax.xlane.f32.xlu0 %v403
    %v483 = vpop.xlane.xlu0 %482
    %484 = vmax.xlane.f32.xlu0 %v406
    %v485 = vpop.xlane.xlu0 %484
    %486 = vmax.xlane.f32.xlu0 %v409
    %v487 = vpop.xlane.xlu0 %486
    %488 = vmax.xlane.f32.xlu0 %v412
    %v489 = vpop.xlane.xlu0 %488
    %490 = vmax.xlane.f32.xlu0 %v415
    %v491 = vpop.xlane.xlu0 %490
    %492 = vmax.xlane.f32.xlu0 %v418
    %v493 = vpop.xlane.xlu0 %492
    %494 = vmax.xlane.f32.xlu0 %v421
    %v495 = vpop.xlane.xlu0 %494
    %496 = vmax.xlane.f32.xlu0 %v424
    %v497 = vpop.xlane.xlu0 %496
    %498 = vmax.xlane.f32.xlu0 %v427
    %v499 = vpop.xlane.xlu0 %498
    %500 = vmax.xlane.f32.xlu0 %v430
    %v501 = vpop.xlane.xlu0 %500
    %502 = vmax.xlane.f32.xlu0 %v433
    %v503 = vpop.xlane.xlu0 %502
    %504 = vmax.xlane.f32.xlu0 %v436
    %v505 = vpop.xlane.xlu0 %504
    %506 = vmax.xlane.f32.xlu0 %v439
    %v507 = vpop.xlane.xlu0 %506
    %508 = vmax.xlane.f32.xlu0 %v442
    %v509 = vpop.xlane.xlu0 %508
    %510 = vmax.xlane.f32.xlu0 %v445
    %v511 = vpop.xlane.xlu0 %510
    %512 = vmax.xlane.f32.xlu0 %v448
    %v513 = vpop.xlane.xlu0 %512
    %v514 = vsub.f32 %v355, %v451
    %v515 = vsub.f32 %v358, %v453
    %v516 = vsub.f32 %v361, %v455
    %v517 = vsub.f32 %v364, %v457
    %v518 = vsub.f32 %v367, %v459
    %v519 = vsub.f32 %v370, %v461
    %v520 = vsub.f32 %v373, %v463
    %v521 = vsub.f32 %v376, %v465
    %v522 = vsub.f32 %v379, %v467
    %v523 = vsub.f32 %v382, %v469
    %v524 = vsub.f32 %v385, %v471
    %v525 = vsub.f32 %v388, %v473
    %v526 = vsub.f32 %v391, %v475
    %v527 = vsub.f32 %v394, %v477
    %v528 = vsub.f32 %v397, %v479
    %v529 = vsub.f32 %v400, %v481
    %v530 = vsub.f32 %v403, %v483
    %v531 = vsub.f32 %v406, %v485
    %v532 = vsub.f32 %v409, %v487
    %v533 = vsub.f32 %v412, %v489
    %v534 = vsub.f32 %v415, %v491
    %v535 = vsub.f32 %v418, %v493
    %v536 = vsub.f32 %v421, %v495
    %v537 = vsub.f32 %v424, %v497
    %v538 = vsub.f32 %v427, %v499
    %v539 = vsub.f32 %v430, %v501
    %v540 = vsub.f32 %v433, %v503
    %v541 = vsub.f32 %v436, %v505
    %v542 = vsub.f32 %v439, %v507
    %v543 = vsub.f32 %v442, %v509
    %v544 = vsub.f32 %v445, %v511
    %v545 = vsub.f32 %v448, %v513
    %v546 = vmul.f32 %v514, 1.442695
    %v547 = vpow.pop %v546
    %v548 = vmul.f32 %v515, 1.442695
    %v549 = vpow.pop %v548
    %v550 = vmul.f32 %v516, 1.442695
    %v551 = vpow.pop %v550
    %v552 = vmul.f32 %v517, 1.442695
    %v553 = vpow.pop %v552
    %v554 = vmul.f32 %v518, 1.442695
    %v555 = vpow.pop %v554
    %v556 = vmul.f32 %v519, 1.442695
    %v557 = vpow.pop %v556
    %v558 = vmul.f32 %v520, 1.442695
    %v559 = vpow.pop %v558
    %v560 = vmul.f32 %v521, 1.442695
    %v561 = vpow.pop %v560
    %v562 = vmul.f32 %v522, 1.442695
    %v563 = vpow.pop %v562
    %v564 = vmul.f32 %v523, 1.442695
    %v565 = vpow.pop %v564
    %v566 = vmul.f32 %v524, 1.442695
    %v567 = vpow.pop %v566
    %v568 = vmul.f32 %v525, 1.442695
    %v569 = vpow.pop %v568
    %v570 = vmul.f32 %v526, 1.442695
    %v571 = vpow.pop %v570
    %v572 = vmul.f32 %v527, 1.442695
    %v573 = vpow.pop %v572
    %v574 = vmul.f32 %v528, 1.442695
    %v575 = vpow.pop %v574
    %v576 = vmul.f32 %v529, 1.442695
    %v577 = vpow.pop %v576
    %v578 = vmul.f32 %v530, 1.442695
    %v579 = vpow.pop %v578
    %v580 = vmul.f32 %v531, 1.442695
    %v581 = vpow.pop %v580
    %v582 = vmul.f32 %v532, 1.442695
    %v583 = vpow.pop %v582
    %v584 = vmul.f32 %v533, 1.442695
    %v585 = vpow.pop %v584
    %v586 = vmul.f32 %v534, 1.442695
    %v587 = vpow.pop %v586
    %v588 = vmul.f32 %v535, 1.442695
    %v589 = vpow.pop %v588
    %v590 = vmul.f32 %v536, 1.442695
    %v591 = vpow.pop %v590
    %v592 = vmul.f32 %v537, 1.442695
    %v593 = vpow.pop %v592
    %v594 = vmul.f32 %v538, 1.442695
    %v595 = vpow.pop %v594
    %v596 = vmul.f32 %v539, 1.442695
    %v597 = vpow.pop %v596
    %v598 = vmul.f32 %v540, 1.442695
    %v599 = vpow.pop %v598
    %v600 = vmul.f32 %v541, 1.442695
    %v601 = vpow.pop %v600
    %v602 = vmul.f32 %v542, 1.442695
    %v603 = vpow.pop %v602
    %v604 = vmul.f32 %v543, 1.442695
    %v605 = vpow.pop %v604
    %v606 = vmul.f32 %v544, 1.442695
    %v607 = vpow.pop %v606
    %v608 = vmul.f32 %v545, 1.442695
    %v609 = vpow.pop %v608
    %610 = vadd.xlane.f32.xlu0 %v547
    %v611 = vpop.xlane.xlu0 %610
    %612 = vadd.xlane.f32.xlu0 %v549
    %v613 = vpop.xlane.xlu0 %612
    %614 = vadd.xlane.f32.xlu0 %v551
    %v615 = vpop.xlane.xlu0 %614
    %616 = vadd.xlane.f32.xlu0 %v553
    %v617 = vpop.xlane.xlu0 %616
    %618 = vadd.xlane.f32.xlu0 %v555
    %v619 = vpop.xlane.xlu0 %618
    %620 = vadd.xlane.f32.xlu0 %v557
    %v621 = vpop.xlane.xlu0 %620
    %622 = vadd.xlane.f32.xlu0 %v559
    %v623 = vpop.xlane.xlu0 %622
    %624 = vadd.xlane.f32.xlu0 %v561
    %v625 = vpop.xlane.xlu0 %624
    %626 = vadd.xlane.f32.xlu0 %v563
    %v627 = vpop.xlane.xlu0 %626
    %628 = vadd.xlane.f32.xlu0 %v565
    %v629 = vpop.xlane.xlu0 %628
    %630 = vadd.xlane.f32.xlu0 %v567
    %v631 = vpop.xlane.xlu0 %630
    %632 = vadd.xlane.f32.xlu0 %v569
    %v633 = vpop.xlane.xlu0 %632
    %634 = vadd.xlane.f32.xlu0 %v571
    %v635 = vpop.xlane.xlu0 %634
    %636 = vadd.xlane.f32.xlu0 %v573
    %v637 = vpop.xlane.xlu0 %636
    %638 = vadd.xlane.f32.xlu0 %v575
    %v639 = vpop.xlane.xlu0 %638
    %640 = vadd.xlane.f32.xlu0 %v577
    %v641 = vpop.xlane.xlu0 %640
    %642 = vadd.xlane.f32.xlu0 %v579
    %v643 = vpop.xlane.xlu0 %642
    %644 = vadd.xlane.f32.xlu0 %v581
    %v645 = vpop.xlane.xlu0 %644
    %646 = vadd.xlane.f32.xlu0 %v583
    %v647 = vpop.xlane.xlu0 %646
    %648 = vadd.xlane.f32.xlu0 %v585
    %v649 = vpop.xlane.xlu0 %648
    %650 = vadd.xlane.f32.xlu0 %v587
    %v651 = vpop.xlane.xlu0 %650
    %652 = vadd.xlane.f32.xlu0 %v589
    %v653 = vpop.xlane.xlu0 %652
    %654 = vadd.xlane.f32.xlu0 %v591
    %v655 = vpop.xlane.xlu0 %654
    %656 = vadd.xlane.f32.xlu0 %v593
    %v657 = vpop.xlane.xlu0 %656
    %658 = vadd.xlane.f32.xlu0 %v595
    %v659 = vpop.xlane.xlu0 %658
    %660 = vadd.xlane.f32.xlu0 %v597
    %v661 = vpop.xlane.xlu0 %660
    %662 = vadd.xlane.f32.xlu0 %v599
    %v663 = vpop.xlane.xlu0 %662
    %664 = vadd.xlane.f32.xlu0 %v601
    %v665 = vpop.xlane.xlu0 %664
    %666 = vadd.xlane.f32.xlu0 %v603
    %v667 = vpop.xlane.xlu0 %666
    %668 = vadd.xlane.f32.xlu0 %v605
    %v669 = vpop.xlane.xlu0 %668
    %670 = vadd.xlane.f32.xlu0 %v607
    %v671 = vpop.xlane.xlu0 %670
    %672 = vadd.xlane.f32.xlu0 %v609
    %v673 = vpop.xlane.xlu0 %672
    %v674 = vrcp.pop %v611
    %v675 = vrcp.pop %v613
    %v676 = vrcp.pop %v615
    %v677 = vrcp.pop %v617
    %v678 = vrcp.pop %v619
    %v679 = vrcp.pop %v621
    %v680 = vrcp.pop %v623
    %v681 = vrcp.pop %v625
    %v682 = vrcp.pop %v627
    %v683 = vrcp.pop %v629
    %v684 = vrcp.pop %v631
    %v685 = vrcp.pop %v633
    %v686 = vrcp.pop %v635
    %v687 = vrcp.pop %v637
    %v688 = vrcp.pop %v639
    %v689 = vrcp.pop %v641
    %v690 = vrcp.pop %v643
    %v691 = vrcp.pop %v645
    %v692 = vrcp.pop %v647
    %v693 = vrcp.pop %v649
    %v694 = vrcp.pop %v651
    %v695 = vrcp.pop %v653
    %v696 = vrcp.pop %v655
    %v697 = vrcp.pop %v657
    %v698 = vrcp.pop %v659
    %v699 = vrcp.pop %v661
    %v700 = vrcp.pop %v663
    %v701 = vrcp.pop %v665
    %v702 = vrcp.pop %v667
    %v703 = vrcp.pop %v669
    %v704 = vrcp.pop %v671
    %v705 = vrcp.pop %v673
    %v706 = vmul.f32 %v611, %v674
    %v707 = vmul.f32 %v613, %v675
    %v708 = vmul.f32 %v615, %v676
    %v709 = vmul.f32 %v617, %v677
    %v710 = vmul.f32 %v619, %v678
    %v711 = vmul.f32 %v621, %v679
    %v712 = vmul.f32 %v623, %v680
    %v713 = vmul.f32 %v625, %v681
    %v714 = vmul.f32 %v627, %v682
    %v715 = vmul.f32 %v629, %v683
    %v716 = vmul.f32 %v631, %v684
    %v717 = vmul.f32 %v633, %v685
    %v718 = vmul.f32 %v635, %v686
    %v719 = vmul.f32 %v637, %v687
    %v720 = vmul.f32 %v639, %v688
    %v721 = vmul.f32 %v641, %v689
    %v722 = vmul.f32 %v643, %v690
    %v723 = vmul.f32 %v645, %v691
    %v724 = vmul.f32 %v647, %v692
    %v725 = vmul.f32 %v649, %v693
    %v726 = vmul.f32 %v651, %v694
    %v727 = vmul.f32 %v653, %v695
    %v728 = vmul.f32 %v655, %v696
    %v729 = vmul.f32 %v657, %v697
    %v730 = vmul.f32 %v659, %v698
    %v731 = vmul.f32 %v661, %v699
    %v732 = vmul.f32 %v663, %v700
    %v733 = vmul.f32 %v665, %v701
    %v734 = vmul.f32 %v667, %v702
    %v735 = vmul.f32 %v669, %v703
    %v736 = vmul.f32 %v671, %v704
    %v737 = vmul.f32 %v673, %v705
    %v738 = vsub.f32 2.0, %v706
    %v739 = vsub.f32 2.0, %v707
    %v740 = vsub.f32 2.0, %v708
    %v741 = vsub.f32 2.0, %v709
    %v742 = vsub.f32 2.0, %v710
    %v743 = vsub.f32 2.0, %v711
    %v744 = vsub.f32 2.0, %v712
    %v745 = vsub.f32 2.0, %v713
    %v746 = vsub.f32 2.0, %v714
    %v747 = vsub.f32 2.0, %v715
    %v748 = vsub.f32 2.0, %v716
    %v749 = vsub.f32 2.0, %v717
    %v750 = vsub.f32 2.0, %v718
    %v751 = vsub.f32 2.0, %v719
    %v752 = vsub.f32 2.0, %v720
    %v753 = vsub.f32 2.0, %v721
    %v754 = vsub.f32 2.0, %v722
    %v755 = vsub.f32 2.0, %v723
    %v756 = vsub.f32 2.0, %v724
    %v757 = vsub.f32 2.0, %v725
    %v758 = vsub.f32 2.0, %v726
    %v759 = vsub.f32 2.0, %v727
    %v760 = vsub.f32 2.0, %v728
    %v761 = vsub.f32 2.0, %v729
    %v762 = vsub.f32 2.0, %v730
    %v763 = vsub.f32 2.0, %v731
    %v764 = vsub.f32 2.0, %v732
    %v765 = vsub.f32 2.0, %v733
    %v766 = vsub.f32 2.0, %v734
    %v767 = vsub.f32 2.0, %v735
    %v768 = vsub.f32 2.0, %v736
    %v769 = vsub.f32 2.0, %v737
    %v770 = vmul.f32 %v674, %v738
    %v771 = vmul.f32 %v675, %v739
    %v772 = vmul.f32 %v676, %v740
    %v773 = vmul.f32 %v677, %v741
    %v774 = vmul.f32 %v678, %v742
    %v775 = vmul.f32 %v679, %v743
    %v776 = vmul.f32 %v680, %v744
    %v777 = vmul.f32 %v681, %v745
    %v778 = vmul.f32 %v682, %v746
    %v779 = vmul.f32 %v683, %v747
    %v780 = vmul.f32 %v684, %v748
    %v781 = vmul.f32 %v685, %v749
    %v782 = vmul.f32 %v686, %v750
    %v783 = vmul.f32 %v687, %v751
    %v784 = vmul.f32 %v688, %v752
    %v785 = vmul.f32 %v689, %v753
    %v786 = vmul.f32 %v690, %v754
    %v787 = vmul.f32 %v691, %v755
    %v788 = vmul.f32 %v692, %v756
    %v789 = vmul.f32 %v693, %v757
    %v790 = vmul.f32 %v694, %v758
    %v791 = vmul.f32 %v695, %v759
    %v792 = vmul.f32 %v696, %v760
    %v793 = vmul.f32 %v697, %v761
    %v794 = vmul.f32 %v698, %v762
    %v795 = vmul.f32 %v699, %v763
    %v796 = vmul.f32 %v700, %v764
    %v797 = vmul.f32 %v701, %v765
    %v798 = vmul.f32 %v702, %v766
    %v799 = vmul.f32 %v703, %v767
    %v800 = vmul.f32 %v704, %v768
    %v801 = vmul.f32 %v705, %v769
    %v802 = vmul.f32 %v547, %v770
    %v803 = vmul.f32 %v549, %v771
    %v804 = vmul.f32 %v551, %v772
    %v805 = vmul.f32 %v553, %v773
    %v806 = vmul.f32 %v555, %v774
    %v807 = vmul.f32 %v557, %v775
    %v808 = vmul.f32 %v559, %v776
    %v809 = vmul.f32 %v561, %v777
    %v810 = vmul.f32 %v563, %v778
    %v811 = vmul.f32 %v565, %v779
    %v812 = vmul.f32 %v567, %v780
    %v813 = vmul.f32 %v569, %v781
    %v814 = vmul.f32 %v571, %v782
    %v815 = vmul.f32 %v573, %v783
    %v816 = vmul.f32 %v575, %v784
    %v817 = vmul.f32 %v577, %v785
    %v818 = vmul.f32 %v579, %v786
    %v819 = vmul.f32 %v581, %v787
    %v820 = vmul.f32 %v583, %v788
    %v821 = vmul.f32 %v585, %v789
    %v822 = vmul.f32 %v587, %v790
    %v823 = vmul.f32 %v589, %v791
    %v824 = vmul.f32 %v591, %v792
    %v825 = vmul.f32 %v593, %v793
    %v826 = vmul.f32 %v595, %v794
    %v827 = vmul.f32 %v597, %v795
    %v828 = vmul.f32 %v599, %v796
    %v829 = vmul.f32 %v601, %v797
    %v830 = vmul.f32 %v603, %v798
    %v831 = vmul.f32 %v605, %v799
    %v832 = vmul.f32 %v607, %v800
    %v833 = vmul.f32 %v609, %v801
    %834 = vst [vmem:[#allocation2] sm:$0xff] %v802
    %835 = vst [vmem:[#allocation2 + $0x8] sm:$0xff] %v803
    %836 = vst [vmem:[#allocation2 + $0x10] sm:$0xff] %v804
    %837 = vst [vmem:[#allocation2 + $0x18] sm:$0xff] %v805
    %838 = vst [vmem:[#allocation2 + $0x20] sm:$0xff] %v806
    %839 = vst [vmem:[#allocation2 + $0x28] sm:$0xff] %v807
    %840 = vst [vmem:[#allocation2 + $0x30] sm:$0xff] %v808
    %841 = vst [vmem:[#allocation2 + $0x38] sm:$0xff] %v809
    %842 = vst [vmem:[#allocation2 + $0x40] sm:$0xff] %v810
    %843 = vst [vmem:[#allocation2 + $0x48] sm:$0xff] %v811
    %844 = vst [vmem:[#allocation2 + $0x50] sm:$0xff] %v812
    %845 = vst [vmem:[#allocation2 + $0x58] sm:$0xff] %v813
    %846 = vst [vmem:[#allocation2 + $0x60] sm:$0xff] %v814
    %847 = vst [vmem:[#allocation2 + $0x68] sm:$0xff] %v815
    %848 = vst [vmem:[#allocation2 + $0x70] sm:$0xff] %v816
    %849 = vst [vmem:[#allocation2 + $0x78] sm:$0xff] %v817
    %850 = vst [vmem:[#allocation2 + $0x80] sm:$0xff] %v818
    %851 = vst [vmem:[#allocation2 + $0x88] sm:$0xff] %v819
    %852 = vst [vmem:[#allocation2 + $0x90] sm:$0xff] %v820
    %853 = vst [vmem:[#allocation2 + $0x98] sm:$0xff] %v821
    %854 = vst [vmem:[#allocation2 + $0xa0] sm:$0xff] %v822
    %855 = vst [vmem:[#allocation2 + $0xa8] sm:$0xff] %v823
    %856 = vst [vmem:[#allocation2 + $0xb0] sm:$0xff] %v824
    %857 = vst [vmem:[#allocation2 + $0xb8] sm:$0xff] %v825
    %858 = vst [vmem:[#allocation2 + $0xc0] sm:$0xff] %v826
    %859 = vst [vmem:[#allocation2 + $0xc8] sm:$0xff] %v827
    %860 = vst [vmem:[#allocation2 + $0xd0] sm:$0xff] %v828
    %861 = vst [vmem:[#allocation2 + $0xd8] sm:$0xff] %v829
    %862 = vst [vmem:[#allocation2 + $0xe0] sm:$0xff] %v830
    %863 = vst [vmem:[#allocation2 + $0xe8] sm:$0xff] %v831
    %864 = vst [vmem:[#allocation2 + $0xf0] sm:$0xff] %v832
    %865 = vst [vmem:[#allocation2 + $0xf8] sm:$0xff] %v833
    // Predicated region
    $region22: #{tpu_custom_call.1} parent=1 // pred_check
      _
    $region23: #{tpu_custom_call.1} parent=1 // pred_check_branch
      %867 = sbr.rel (0) target = $region25
    $region24: #{tpu_custom_call.1} parent=1 // pred_region
      %869 = vsyncadd [#allocation3], 0
      %s870 = sshll.u32 [#allocation2], 4
      %s871 = int_to_ptr.vmem [resolvable:$true] %s870
      %s872 = sshll.u32 %s5, 4
      %s873 = int_to_ptr.hbm [resolvable:$true] %s872
      %878 = dma.vmem_to_hbm [thread:$0]  %s871, 4096, %s873, [#allocation3], 128, 128, 8
    $region25: #{tpu_custom_call.1} parent=1 // pred_fallthru
      _
    // Predicated region
    $region26: #{tpu_custom_call.1} parent=1 // pred_check
      _
    $region27: #{tpu_custom_call.1} parent=1 // pred_check_branch
      %880 = sbr.rel (0) target = $region29
    $region28: #{tpu_custom_call.1} parent=1 // pred_region
      %882 = dma.done [#allocation3], 4096
    $region29: #{tpu_custom_call.1} parent=1 // pred_fallthru
      _
    %883 = vsyncpa [#allocation3], 1

</llo_original>
